<compile_context>
chip_gen: v7x
topology: tpu7x:2x2x1
jax: 0.10.0
libtpu: 0.0.40
codegen_flags: <defaults>
</compile_context>

<pallas_src>
import jax
import jax.numpy as jnp
from jax.experimental import pallas as pl
from jax.experimental.pallas import tpu as pltpu

IN_F = 2
HID = 50
OUT_F = 1

# Batch-tile cap: amortizes the ~0.35us per-grid-step overhead while keeping
# the (HID, tb) f32 intermediates (+ double-buffered I/O) a few MB -- far under
# the default scoped VMEM on every generation, including v7x.
_TB_CAP = 16384


def _round_up(v, m):
    return -(-v // m) * m


def _pick_tb(n):
    """Pick the batch tile (multiple of 128) for batch size n."""
    n128 = _round_up(n, 128)
    if n128 <= 256:
        return n128                      # tiny batch: one small tile, no waste
    # Prefer >= 2 grid steps so v7x's two TensorCores both get work.
    return min(_TB_CAP, _round_up(n128, 256) // 2)


def _mlp_kernel(xa_ref, w1a_ref, w2_ref, b2_ref, o_ref):
    # xa_ref:  (IN_F+1, tb)  batch on lanes; last row is ones (b1 folded in)
    # w1a_ref: (HID, IN_F+1) [W1^T | b1]   (resident across grid steps)
    # w2_ref:  (1, HID)      W2^T          (resident across grid steps)
    # b2_ref:  (1, 1)        SMEM scalar
    # o_ref:   (1, tb)       lane-dense output
    # Layer 1 (+bias folded in): one MXU matmul, K = IN_F+1.
    h = jnp.dot(w1a_ref[...], xa_ref[...],
                preferred_element_type=jnp.float32)            # (HID, tb)
    h = jnp.maximum(h, 0.0)                                    # ReLU (VPU)
    # Layer 2 (+bias): MXU again (M = 1) -- keeps the VALU nearly idle.
    y = jnp.dot(w2_ref[...], h,
                preferred_element_type=jnp.float32) + b2_ref[0, 0]   # (1, tb)
    # sigmoid(y) = 1 / (1 + exp(-y)); both exp and reciprocal land on the EUP.
    o_ref[...] = pl.reciprocal(1.0 + jnp.exp(-y), approx=True)


def discriminator_forward(x, w1, b1, w2, b2, *, tb=None):
    """x: (N, IN_F) f32 -> (N,) f32 (0-d for N == 1, matching torch .squeeze()).

    Call under jax.jit so the transpose / ones-append / pad fuse with the
    pallas_call instead of making separate HBM passes.
    """
    n = x.shape[0]
    if tb is None:
        tb = _pick_tb(n)
    assert tb % 128 == 0, "batch tile must be a multiple of 128 (lane width)"

    n_steps = pl.cdiv(n, tb)
    n_pad = n_steps * tb

    # Augment x with a ones row (folds b1 into layer 1) and put batch on lanes.
    x32 = x.astype(jnp.float32)
    xa = jnp.concatenate([x32, jnp.ones((n, 1), jnp.float32)], axis=1).T
    if n_pad != n:
        xa = jnp.pad(xa, ((0, 0), (0, n_pad - n)))             # (IN_F+1, n_pad)

    w1a = jnp.concatenate(
        [w1.T.astype(jnp.float32), b1.reshape(HID, 1).astype(jnp.float32)],
        axis=1)                                                # (HID, IN_F+1)
    w2_row = w2.astype(jnp.float32).reshape(1, HID)            # (1, HID) == W2^T
    b2_s = b2.astype(jnp.float32).reshape(1, 1)                # SMEM scalar

    cost = pl.CostEstimate(
        flops=2 * n * (IN_F + 1) * HID + 2 * n * HID,
        transcendentals=2 * n,
        bytes_accessed=4 * (n * (IN_F + 1) + n + HID * (IN_F + 1) + HID + 1),
    )

    out = pl.pallas_call(
        _mlp_kernel,
        out_shape=jax.ShapeDtypeStruct((1, n_pad), jnp.float32),
        grid_spec=pltpu.PrefetchScalarGridSpec(
            num_scalar_prefetch=0,
            grid=(n_steps,),
            in_specs=[
                pl.BlockSpec((IN_F + 1, tb), lambda i: (0, i)),      # x tile
                pl.BlockSpec((HID, IN_F + 1), lambda i: (0, 0)),     # W1a resident
                pl.BlockSpec((1, HID), lambda i: (0, 0)),            # W2^T resident
                pl.BlockSpec(memory_space=pltpu.MemorySpace.SMEM),   # b2 scalar
            ],
            out_specs=pl.BlockSpec((1, tb), lambda i: (0, i)),       # lane-dense
        ),
        compiler_params=pltpu.CompilerParams(
            dimension_semantics=("parallel",)),
        cost_estimate=cost,
    )(xa, w1a, w2_row, b2_s)

    res = out[0, :n]
    if n == 1:           # torch .squeeze() on a (1, 1) output returns a 0-d tensor
        return res[0]
    return res


def _init_params(key):
    # Deterministic synthetic init mimicking nn.Linear's U(-1/sqrt(fan_in), +)
    k1, k2, k3, k4 = jax.random.split(key, 4)
    lim1 = 1.0 / jnp.sqrt(float(IN_F))
    lim2 = 1.0 / jnp.sqrt(float(HID))
    w1 = jax.random.uniform(k1, (IN_F, HID), jnp.float32, -lim1, lim1)
    b1 = jax.random.uniform(k2, (HID,), jnp.float32, -lim1, lim1)
    w2 = jax.random.uniform(k3, (HID, OUT_F), jnp.float32, -lim2, lim2)
    b2 = jax.random.uniform(k4, (OUT_F,), jnp.float32, -lim2, lim2)
    return w1, b1, w2, b2


def _ref(x, w1, b1, w2, b2):
    return jax.nn.sigmoid(
        jnp.maximum(x @ w1 + b1, 0.0) @ w2 + b2).reshape(-1)


if __name__ == "__main__":
    key = jax.random.PRNGKey(0)
    kx, kx2, kx3, kp = jax.random.split(key, 4)
    w1, b1, w2, b2 = _init_params(kp)

    fwd = jax.jit(discriminator_forward, static_argnames=("tb",))
    # The EUP approx-reciprocal sigmoid epilogue trades a few ULPs; sigmoid
    # outputs are in (0, 1) so a 5e-3 tolerance is still a strong sanity check.
    tol = dict(atol=5e-3, rtol=5e-3)

    # Small demo batch: single grid step, single 128-lane tile.
    N = 8
    x = jax.random.normal(kx, (N, IN_F), jnp.float32)
    y = jax.block_until_ready(fwd(x, w1, b1, w2, b2))
    assert y.shape == (N,)
    assert jnp.allclose(y, _ref(x, w1, b1, w2, b2), **tol)

    # Ragged batch: auto tile -> 2 grid steps (padding + megacore-split path).
    N2 = 300
    x2 = jax.random.normal(kx2, (N2, IN_F), jnp.float32)
    y2 = jax.block_until_ready(fwd(x2, w1, b1, w2, b2))
    assert y2.shape == (N2,)
    assert jnp.allclose(y2, _ref(x2, w1, b1, w2, b2), **tol)

    # Explicit tile override: multi-step grid with a ragged tail.
    N3 = 1000
    x3 = jax.random.normal(kx3, (N3, IN_F), jnp.float32)
    y3 = jax.block_until_ready(fwd(x3, w1, b1, w2, b2, tb=256))
    assert y3.shape == (N3,)
    assert jnp.allclose(y3, _ref(x3, w1, b1, w2, b2), **tol)

    # N == 1: torch .squeeze() returns a 0-d tensor; match that behavior.
    x1 = jax.random.normal(key, (1, IN_F), jnp.float32)
    y1 = jax.block_until_ready(fwd(x1, w1, b1, w2, b2))
    assert y1.shape == ()
    assert jnp.allclose(y1, _ref(x1, w1, b1, w2, b2)[0], **tol)

    print("KERNEL_OK")
</pallas_src>

<mosaic_0001>
module attributes {stable_mosaic.version = 11 : i64} {
  func.func @_mlp_kernel(%arg0: i32, %arg1: memref<3x128xf32, #tpu.memory_space<vmem>>, %arg2: memref<50x3xf32, #tpu.memory_space<vmem>>, %arg3: memref<1x50xf32, #tpu.memory_space<vmem>>, %arg4: memref<1x1xf32, #tpu.memory_space<smem>>, %arg5: memref<1x128xf32, #tpu.memory_space<vmem>>) attributes {dimension_semantics = [#tpu.dimension_semantics<parallel>], iteration_bounds = array<i64: 1>, scalar_prefetch = 0 : i64, scratch_operands = 0 : i64, tpu.core_type = #tpu.core_type<tc>, window_params = [{transform_indices = @transform_0, window_bounds = array<i64: 3, 128>}, {pipeline_mode = #tpu.pipeline_mode<synchronous>, transform_indices = @transform_1, window_bounds = array<i64: 50, 3>}, {pipeline_mode = #tpu.pipeline_mode<synchronous>, transform_indices = @transform_2, window_bounds = array<i64: 1, 50>}, {transform_indices = @transform_3, window_bounds = array<i64: 1, 1>}, {transform_indices = @transform_4, window_bounds = array<i64: 1, 128>}]} {
    %c0 = arith.constant 0 : index
    %c0_0 = arith.constant 0 : index
    %0 = vector.load %arg2[%c0, %c0_0] : memref<50x3xf32, #tpu.memory_space<vmem>>, vector<50x3xf32>
    %c0_1 = arith.constant 0 : index
    %c0_2 = arith.constant 0 : index
    %1 = vector.load %arg1[%c0_1, %c0_2] : memref<3x128xf32, #tpu.memory_space<vmem>>, vector<3x128xf32>
    %cst = arith.constant dense<0.000000e+00> : vector<50x128xf32>
    %2 = tpu.matmul %0, %1, %cst {dimension_numbers = #tpu.dot_dimension_numbers<[1], [0], [0], [1], [0, 0, 1, 1], [], []>} : vector<50x3xf32>, vector<3x128xf32>, vector<50x128xf32> -> vector<50x128xf32>
    %cst_3 = arith.constant 0.000000e+00 : f32
    %3 = vector.broadcast %cst_3 : f32 to vector<50x128xf32>
    %4 = arith.maximumf %2, %3 : vector<50x128xf32>
    %c0_4 = arith.constant 0 : index
    %c0_5 = arith.constant 0 : index
    %5 = vector.load %arg3[%c0_4, %c0_5] : memref<1x50xf32, #tpu.memory_space<vmem>>, vector<1x50xf32>
    %cst_6 = arith.constant dense<0.000000e+00> : vector<1x128xf32>
    %6 = tpu.matmul %5, %4, %cst_6 {dimension_numbers = #tpu.dot_dimension_numbers<[1], [0], [0], [1], [0, 0, 1, 1], [], []>} : vector<1x50xf32>, vector<50x128xf32>, vector<1x128xf32> -> vector<1x128xf32>
    %c0_7 = arith.constant 0 : index
    %c0_8 = arith.constant 0 : index
    %7 = memref.load %arg4[%c0_7, %c0_8] : memref<1x1xf32, #tpu.memory_space<smem>>
    %8 = vector.broadcast %7 : f32 to vector<1x128xf32>
    %9 = arith.addf %6, %8 : vector<1x128xf32>
    %cst_9 = arith.constant 0.000000e+00 : f32
    %10 = vector.broadcast %cst_9 : f32 to vector<1x128xf32>
    %11 = arith.subf %10, %9 : vector<1x128xf32>
    %12 = math.exp %11 : vector<1x128xf32>
    %cst_10 = arith.constant 1.000000e+00 : f32
    %13 = vector.broadcast %cst_10 : f32 to vector<1x128xf32>
    %14 = arith.addf %13, %12 : vector<1x128xf32>
    %15 = tpu.reciprocal %14 {approx = true} : vector<1x128xf32> -> vector<1x128xf32>
    %c0_11 = arith.constant 0 : index
    %c0_12 = arith.constant 0 : index
    %16 = vector.load %arg5[%c0_11, %c0_12] : memref<1x128xf32, #tpu.memory_space<vmem>>, vector<1x128xf32>
    tpu.vector_store %arg5[%c0_11, %c0_12], %15 {strides = array<i32>} : memref<1x128xf32, #tpu.memory_space<vmem>>, vector<1x128xf32>,
    return
  }
  func.func @transform_0(%arg0: i32) -> (i32, i32) {
    %c0_i32 = arith.constant 0 : i32
    %c0_i32_0 = arith.constant 0 : i32
    return %c0_i32, %arg0 : i32, i32
  }
  func.func @transform_1(%arg0: i32) -> (i32, i32) {
    %c0_i32 = arith.constant 0 : i32
    %c0_i32_0 = arith.constant 0 : i32
    %c0_i32_1 = arith.constant 0 : i32
    return %c0_i32, %c0_i32_0 : i32, i32
  }
  func.func @transform_2(%arg0: i32) -> (i32, i32) {
    %c0_i32 = arith.constant 0 : i32
    %c0_i32_0 = arith.constant 0 : i32
    %c0_i32_1 = arith.constant 0 : i32
    return %c0_i32, %c0_i32_0 : i32, i32
  }
  func.func @transform_3(%arg0: i32) -> (i32, i32) {
    %c0_i32 = arith.constant 0 : i32
    %c0_i32_0 = arith.constant 0 : i32
    %c0_i32_1 = arith.constant 0 : i32
    return %c0_i32, %c0_i32_0 : i32, i32
  }
  func.func @transform_4(%arg0: i32) -> (i32, i32) {
    %c0_i32 = arith.constant 0 : i32
    %c0_i32_0 = arith.constant 0 : i32
    return %c0_i32, %arg0 : i32, i32
  }
}

</mosaic_0001>

<llo_original>
// kernel: discriminator_forward.1
$region0: #{discriminator_forward.1}
  #allocation0 [shape = 'u32[]', space=smem, size = 0x4, offset = 0x4, fixed_abs, tag = 'smem constant byte address 0x4 - core index']
  #allocation1 [shape = 'u32[144,128]{1,0:T(1,128)}', space=vmem, size = 0x12000, scoped, tag = 'internal scratch']
  #allocation2 [shape = 'f32[1,1]{1,0:T(1,128)S(6)}', space=smem, size = 0x200, scoped, tag = 'scoped memory for discriminator_forward.1']
  %s0 = inlined_call_operand.vmem [shape: f32[3,128], index: 0, kind: input, shape index: {}]
  %s1 = inlined_call_operand.vmem [shape: f32[50,3], index: 1, kind: input, shape index: {}]
  %s2 = inlined_call_operand.vmem [shape: f32[1,50], index: 2, kind: input, shape index: {}]
  %s3 = inlined_call_operand.<no memory space> [shape: f32[1,1], index: 3, kind: input, shape index: {}]
  %s4 = inlined_call_operand.vmem [shape: f32[1,128], index: 4, kind: output, shape index: {}]
  %s5 = sld [smem:[#allocation0]]
  $region26: #{discriminator_forward.1} parent=0
    _
  %s7 = ssub.s32 1, %s5
  %s8 = scalar_select 0, %s7, %s5
  %9 = sst [smem:[#allocation2]] %s3
  // Predicated region
  $region2: #{discriminator_forward.1} parent=0 // pred_check
    _
  $region3: #{discriminator_forward.1} parent=0 // pred_check_branch
    %11 = sbr.rel (0) target = $region5
  $region4: #{discriminator_forward.1} parent=0 // pred_region
    _
  $region5: #{discriminator_forward.1} parent=0 // pred_fallthru
    _
  // Predicated region
  $region6: #{discriminator_forward.1} parent=0 // pred_check
    _
  $region7: #{discriminator_forward.1} parent=0 // pred_check_branch
    %13 = sbr.rel (0) target = $region9
  $region8: #{discriminator_forward.1} parent=0 // pred_region
    _
  $region9: #{discriminator_forward.1} parent=0 // pred_fallthru
    _
  // Predicated region
  $region10: #{discriminator_forward.1} parent=0 // pred_check
    _
  $region11: #{discriminator_forward.1} parent=0 // pred_check_branch
    %15 = sbr.rel (0) target = $region13
  $region12: #{discriminator_forward.1} parent=0 // pred_region
    _
  $region13: #{discriminator_forward.1} parent=0 // pred_fallthru
    _
  // Predicated region
  $region14: #{discriminator_forward.1} parent=0 // pred_check
    _
  $region15: #{discriminator_forward.1} parent=0 // pred_check_branch
    %17 = sbr.rel (0) target = $region17
  $region16: #{discriminator_forward.1} parent=0 // pred_region
    _
  $region17: #{discriminator_forward.1} parent=0 // pred_fallthru
    _
  %v18 = vld [vmem:[%s1] sm:$0xff]
  %v19 = vld [vmem:[%s1 + $0x8] sm:$0xff]
  %v20 = vld [vmem:[%s1 + $0x10] sm:$0xff]
  %v21 = vld [vmem:[%s1 + $0x18] sm:$0xff]
  %v22 = vld [vmem:[%s1 + $0x20] sm:$0xff]
  %v23 = vld [vmem:[%s1 + $0x28] sm:$0xff]
  %v24 = vld [vmem:[%s1 + $0x30] sm:$0x3]
  %v25 = vld [vmem:[%s0] sm:$0x7]
  %vm26 = vcmask 23552
  %v28 = vsel %vm26, %v18, 0
  %v31 = vsel %vm26, %v19, 0
  %v34 = vsel %vm26, %v20, 0
  %v37 = vsel %vm26, %v21, 0
  %v40 = vsel %vm26, %v22, 0
  %v43 = vsel %vm26, %v23, 0
  %v46 = vsel %vm26, %v24, 0
  %vm48 = vcmask 1042432
  %v50 = vsel %vm48, %v25, 0
  %52 = vmatprep.subr.mxu0 0.0
  %53 = vmatpush1.msra.mxu0 %v50
  %54 = vmatprep.subr.mxu0 0.0
  %55 = vmatpush1.msra.mxu0 0.0
  %56 = vmatprep.subr.mxu0 0.0
  %57 = vmatpush1.msra.mxu0 0.0
  %58 = vmatprep.subr.mxu0 0.0
  %59 = vmatpush1.msra.mxu0 0.0
  %60 = vmatprep.subr.mxu0 0.0
  %61 = vmatpush1.msra.mxu0 0.0
  %62 = vmatprep.subr.mxu0 0.0
  %63 = vmatpush1.msra.mxu0 0.0
  %64 = vmatprep.subr.mxu0 0.0
  %65 = vmatpush1.msra.mxu0 0.0
  %66 = vmatprep.subr.mxu0 0.0
  %67 = vmatpush1.msra.mxu0 0.0
  %68 = vmatprep.subr.mxu0 0.0
  %69 = vmatpush1.msra.mxu0 0.0
  %70 = vmatprep.subr.mxu0 0.0
  %71 = vmatpush1.msra.mxu0 0.0
  %72 = vmatprep.subr.mxu0 0.0
  %73 = vmatpush1.msra.mxu0 0.0
  %74 = vmatprep.subr.mxu0 0.0
  %75 = vmatpush1.msra.mxu0 0.0
  %76 = vmatprep.subr.mxu0 0.0
  %77 = vmatpush1.msra.mxu0 0.0
  %78 = vmatprep.subr.mxu0 0.0
  %79 = vmatpush1.msra.mxu0 0.0
  %80 = vmatprep.subr.mxu0 0.0
  %81 = vmatpush1.msra.mxu0 0.0
  %82 = vmatprep.subr.mxu0 0.0
  %83 = vmatpush1.msra.mxu0 0.0
  %84 = vmatprep.subr.mxu0 0.0
  %85 = vmatpush1.msra.mxu0 0.0
  %86 = vmatprep.subr.mxu0 0.0
  %87 = vmatpush1.msra.mxu0 0.0
  %88 = vmatprep.subr.mxu0 0.0
  %89 = vmatpush1.msra.mxu0 0.0
  %90 = vmatprep.subr.mxu0 0.0
  %91 = vmatpush1.msra.mxu0 0.0
  %92 = vmatprep.subr.mxu0 0.0
  %93 = vmatpush1.msra.mxu0 0.0
  %94 = vmatprep.subr.mxu0 0.0
  %95 = vmatpush1.msra.mxu0 0.0
  %96 = vmatprep.subr.mxu0 0.0
  %97 = vmatpush1.msra.mxu0 0.0
  %98 = vmatprep.subr.mxu0 0.0
  %99 = vmatpush1.msra.mxu0 0.0
  %100 = vmatprep.subr.mxu0 0.0
  %101 = vmatpush1.msra.mxu0 0.0
  %102 = vmatprep.subr.mxu0 0.0
  %103 = vmatpush1.msra.mxu0 0.0
  %104 = vmatprep.subr.mxu0 0.0
  %105 = vmatpush1.msra.mxu0 0.0
  %106 = vmatprep.subr.mxu0 0.0
  %107 = vmatpush1.msra.mxu0 0.0
  %108 = vmatprep.subr.mxu0 0.0
  %109 = vmatpush1.msra.mxu0 0.0
  %110 = vmatprep.subr.mxu0 0.0
  %111 = vmatpush1.msra.mxu0 0.0
  %112 = vmatprep.subr.mxu0 0.0
  %113 = vmatpush1.msra.mxu0 0.0
  %114 = vmatprep.subr.mxu0 0.0
  %115 = vmatpush1.msra.mxu0 0.0
  %116 = vmatprep.mubr.f32.mxu0 0.0
  %117 = vmatmul.mubr.f32.gmra.mrb[0].mxu0 %v28
  %v118 = vpop.f32.mrb[0].mxu0
  %v119 = vadd.f32 0.0, %v118
  %v120 = vpop.f32.mrb[0].mxu0
  %121 = vmatprep.mubr.f32.mxu0 0.0
  %122 = vmatmul.mubr.f32.gmra.mrb[0].mxu0 %v31
  %v123 = vpop.f32.mrb[0].mxu0
  %v124 = vadd.f32 0.0, %v123
  %v125 = vpop.f32.mrb[0].mxu0
  %126 = vmatprep.mubr.f32.mxu0 0.0
  %127 = vmatmul.mubr.f32.gmra.mrb[0].mxu0 %v34
  %v128 = vpop.f32.mrb[0].mxu0
  %v129 = vadd.f32 0.0, %v128
  %v130 = vpop.f32.mrb[0].mxu0
  %131 = vmatprep.mubr.f32.mxu0 0.0
  %132 = vmatmul.mubr.f32.gmra.mrb[0].mxu0 %v37
  %v133 = vpop.f32.mrb[0].mxu0
  %v134 = vadd.f32 0.0, %v133
  %v135 = vpop.f32.mrb[0].mxu0
  %136 = vmatprep.mubr.f32.mxu0 0.0
  %137 = vmatmul.mubr.f32.gmra.mrb[0].mxu0 %v40
  %v138 = vpop.f32.mrb[0].mxu0
  %v139 = vadd.f32 0.0, %v138
  %v140 = vpop.f32.mrb[0].mxu0
  %141 = vmatprep.mubr.f32.mxu0 0.0
  %142 = vmatmul.mubr.f32.gmra.mrb[0].mxu0 %v43
  %v143 = vpop.f32.mrb[0].mxu0
  %v144 = vadd.f32 0.0, %v143
  %v145 = vpop.f32.mrb[0].mxu0
  %146 = vmatprep.mubr.f32.mxu0 0.0
  %147 = vmatmul.mubr.f32.gmra.mrb[0].mxu0 %v46
  %v148 = vpop.f32.mrb[0].mxu0
  %v149 = vadd.f32 0.0, %v148
  %v150 = vpop.f32.mrb[0].mxu0
  %151 = vdwg.mxu0
  %v152 = vmax.f32 %v119, 0.0
  %v153 = vmax.f32 %v124, 0.0
  %v154 = vmax.f32 %v129, 0.0
  %v155 = vmax.f32 %v134, 0.0
  %v156 = vmax.f32 %v139, 0.0
  %v157 = vmax.f32 %v144, 0.0
  %v158 = vmax.f32 %v149, 0.0
  %v159 = vld [vmem:[%s2] sm:$0x1]
  %s160 = sld [smem:[#allocation2]]
  %v161 = vstv %s160
  %vm162 = vcmask 408576
  %v164 = vsel %vm162, %v159, 0
  %vm166 = vcmask 1041408
  %v168 = vsel %vm166, %v158, 0
  %170 = vmatprep.subr.mxu0 0.0
  %171 = vmatpush1.msra.mxu0 %v152
  %172 = vmatprep.subr.mxu0 0.0
  %173 = vmatpush1.msra.mxu0 %v153
  %174 = vmatprep.subr.mxu0 0.0
  %175 = vmatpush1.msra.mxu0 %v154
  %176 = vmatprep.subr.mxu0 0.0
  %177 = vmatpush1.msra.mxu0 %v155
  %178 = vmatprep.subr.mxu0 0.0
  %179 = vmatpush1.msra.mxu0 %v156
  %180 = vmatprep.subr.mxu0 0.0
  %181 = vmatpush1.msra.mxu0 %v157
  %182 = vmatprep.subr.mxu0 0.0
  %183 = vmatpush1.msra.mxu0 %v168
  %184 = vmatprep.subr.mxu0 0.0
  %185 = vmatpush1.msra.mxu0 0.0
  %186 = vmatprep.subr.mxu0 0.0
  %187 = vmatpush1.msra.mxu0 0.0
  %188 = vmatprep.subr.mxu0 0.0
  %189 = vmatpush1.msra.mxu0 0.0
  %190 = vmatprep.subr.mxu0 0.0
  %191 = vmatpush1.msra.mxu0 0.0
  %192 = vmatprep.subr.mxu0 0.0
  %193 = vmatpush1.msra.mxu0 0.0
  %194 = vmatprep.subr.mxu0 0.0
  %195 = vmatpush1.msra.mxu0 0.0
  %196 = vmatprep.subr.mxu0 0.0
  %197 = vmatpush1.msra.mxu0 0.0
  %198 = vmatprep.subr.mxu0 0.0
  %199 = vmatpush1.msra.mxu0 0.0
  %200 = vmatprep.subr.mxu0 0.0
  %201 = vmatpush1.msra.mxu0 0.0
  %202 = vmatprep.subr.mxu0 0.0
  %203 = vmatpush1.msra.mxu0 0.0
  %204 = vmatprep.subr.mxu0 0.0
  %205 = vmatpush1.msra.mxu0 0.0
  %206 = vmatprep.subr.mxu0 0.0
  %207 = vmatpush1.msra.mxu0 0.0
  %208 = vmatprep.subr.mxu0 0.0
  %209 = vmatpush1.msra.mxu0 0.0
  %210 = vmatprep.subr.mxu0 0.0
  %211 = vmatpush1.msra.mxu0 0.0
  %212 = vmatprep.subr.mxu0 0.0
  %213 = vmatpush1.msra.mxu0 0.0
  %214 = vmatprep.subr.mxu0 0.0
  %215 = vmatpush1.msra.mxu0 0.0
  %216 = vmatprep.subr.mxu0 0.0
  %217 = vmatpush1.msra.mxu0 0.0
  %218 = vmatprep.subr.mxu0 0.0
  %219 = vmatpush1.msra.mxu0 0.0
  %220 = vmatprep.subr.mxu0 0.0
  %221 = vmatpush1.msra.mxu0 0.0
  %222 = vmatprep.subr.mxu0 0.0
  %223 = vmatpush1.msra.mxu0 0.0
  %224 = vmatprep.subr.mxu0 0.0
  %225 = vmatpush1.msra.mxu0 0.0
  %226 = vmatprep.subr.mxu0 0.0
  %227 = vmatpush1.msra.mxu0 0.0
  %228 = vmatprep.subr.mxu0 0.0
  %229 = vmatpush1.msra.mxu0 0.0
  %230 = vmatprep.subr.mxu0 0.0
  %231 = vmatpush1.msra.mxu0 0.0
  %232 = vmatprep.subr.mxu0 0.0
  %233 = vmatpush1.msra.mxu0 0.0
  %234 = vmatprep.mubr.f32.mxu0 0.0
  %235 = vmatmul.mubr.f32.gmra.mrb[0].mxu0 %v164
  %v236 = vpop.f32.mrb[0].mxu0
  %v237 = vadd.f32 %v161, %v236
  %v238 = vpop.f32.mrb[0].mxu0
  %239 = vdwg.mxu0
  %v240 = vsub.f32 0.0, %v237
  %v241 = vmul.f32 %v240, 1.442695
  %v242 = vpow.pop %v241
  %v243 = vadd.f32 %v242, 1.0
  %v244 = vrcp.pop %v243
  %245 = vst [vmem:[%s4] sm:$0x1] %v244
  // Predicated region
  $region18: #{discriminator_forward.1} parent=0 // pred_check
    _
  $region19: #{discriminator_forward.1} parent=0 // pred_check_branch
    %247 = sbr.rel (0) target = $region21
  $region20: #{discriminator_forward.1} parent=0 // pred_region
    _
  $region21: #{discriminator_forward.1} parent=0 // pred_fallthru
    _
  // Predicated region
  $region22: #{discriminator_forward.1} parent=0 // pred_check
    _
  $region23: #{discriminator_forward.1} parent=0 // pred_check_branch
    %249 = sbr.rel (0) target = $region25
  $region24: #{discriminator_forward.1} parent=0 // pred_region
    _
  $region25: #{discriminator_forward.1} parent=0 // pred_fallthru
    _

</llo_original>
